<compile_context>
chip_gen: v5e
topology: v5e:2x2
jax: 0.10.0
libtpu: 0.0.40
codegen_flags: <defaults>
</compile_context>

<pallas_src>
import functools

import jax
import jax.numpy as jnp
from jax.experimental import pallas as pl
from jax.experimental.pallas import tpu as pltpu

N_PAD = 128  # lane-dense output width (n_actions padded up to this)


def _ceil_to(v, m):
    return -(-v // m) * m


def cbow_fused_kernel(x_ref, wf_ref, w2_ref, b_ref, out_ref):
    # x_ref : (TB, F)       bf16, packed [s1 | onehot(a1) | s2 | s3 | onehot(a3)]
    # wf_ref: (F, hidden)   bf16, folded fc1 weight
    # w2_ref: (hidden, NP)  bf16, fc2 weight zero-padded on the lane axis
    # b_ref : (2, BW)       f32,  row 0 = folded fc1 bias (first `hidden` lanes),
    #                             row 1 = padded fc2 bias (first `NP` lanes)
    hidden = wf_ref.shape[1]
    n_pad = w2_ref.shape[1]

    # bf16 operands, f32 accumulation on the MXU; bias-add / ReLU in f32 (v5e VPU has no bf16)
    h = jnp.dot(x_ref[...], wf_ref[...], preferred_element_type=jnp.float32)
    h = jnp.maximum(h + b_ref[0:1, :hidden], 0.0)
    out = jnp.dot(h.astype(jnp.bfloat16), w2_ref[...], preferred_element_type=jnp.float32)
    out = out + b_ref[1:2, :n_pad]
    out_ref[...] = out.astype(out_ref.dtype)


def init_params(key, state_dim, n_actions, embedding_size=16, context_size=5, hidden=128):
    """Torch-equivalent parameters, stored transposed as (in_features, out_features)."""
    ks = jax.random.split(key, 7)
    u = lambda k, shape, bound: jax.random.uniform(
        k, shape, dtype=jnp.float32, minval=-bound, maxval=bound
    )
    return {
        "ws": u(ks[0], (state_dim, embedding_size), 1.0 / jnp.sqrt(state_dim)),
        "bs": u(ks[1], (1, embedding_size), 1.0 / jnp.sqrt(state_dim)),
        "emb": jax.random.normal(ks[2], (n_actions, embedding_size), dtype=jnp.float32),
        "w1": u(ks[3], (embedding_size * context_size, hidden),
                1.0 / jnp.sqrt(embedding_size * context_size)),
        "b1": u(ks[4], (1, hidden), 1.0 / jnp.sqrt(embedding_size * context_size)),
        "w2": u(ks[5], (hidden, n_actions), 1.0 / jnp.sqrt(hidden)),
        "b2": u(ks[6], (1, n_actions), 1.0 / jnp.sqrt(hidden)),
    }


def fold_params(params, n_pad=N_PAD):
    """One-time host-side fold of the projections/embeddings into fc1, plus lane padding.

    Weights are emitted in bf16 (matmul operands); biases stay f32.
    """
    ws, bs, emb = params["ws"], params["bs"], params["emb"]
    w1, b1, w2, b2 = params["w1"], params["b1"], params["w2"], params["b2"]
    E = ws.shape[1]
    hidden = w1.shape[1]
    n_actions = w2.shape[1]

    w1_s1 = w1[0 * E:1 * E]
    w1_a1 = w1[1 * E:2 * E]
    w1_s2 = w1[2 * E:3 * E]
    w1_s3 = w1[3 * E:4 * E]
    w1_a3 = w1[4 * E:5 * E]

    # (3*state_dim + 2*n_actions, hidden): [s1 | onehot(a1) | s2 | s3 | onehot(a3)] @ wfold
    wfold = jnp.concatenate(
        [ws @ w1_s1, emb @ w1_a1, ws @ w1_s2, ws @ w1_s3, emb @ w1_a3], axis=0
    )
    bfold = (b1 + bs @ (w1_s1 + w1_s2 + w1_s3)).astype(jnp.float32)          # (1, hidden)

    w2_pad = jnp.zeros((hidden, n_pad), jnp.float32).at[:, :n_actions].set(w2)
    b2_pad = jnp.zeros((1, n_pad), jnp.float32).at[:, :n_actions].set(b2)

    # pack both biases into one (2, max(hidden, n_pad)) f32 array; kernel slices statically
    bw = max(hidden, n_pad)
    biases = jnp.zeros((2, bw), jnp.float32)
    biases = biases.at[0, :hidden].set(bfold[0])
    biases = biases.at[1, :n_pad].set(b2_pad[0])

    return {
        "wfold": wfold.astype(jnp.bfloat16),
        "w2": w2_pad.astype(jnp.bfloat16),
        "biases": biases,
        "n_actions": n_actions,
        "n_pad": n_pad,
    }


@functools.partial(jax.jit,
                   static_argnames=("n_actions", "tile_b", "out_dtype", "return_padded"))
def _forward_impl(x, wfold, w2_pad, biases, *, n_actions, tile_b, out_dtype, return_padded):
    B, F = x.shape
    n_pad = w2_pad.shape[1]
    hidden = wfold.shape[1]
    bw = biases.shape[1]

    # Batch tile: multiple of 8 sublanes, capped at tile_b.  For B >= 16 additionally cap at
    # ~half the (rounded) batch so the "parallel" grid axis has >= 2 steps (keeps both v7x
    # TensorCores busy; ~0.35 us extra prologue elsewhere, i.e. noise).
    tb = min(tile_b, max(8, _ceil_to(B, 8)))
    if B >= 16:
        tb = min(tb, _ceil_to(_ceil_to(B, 2) // 2, 8))
    tb = max(8, tb)
    Bp = _ceil_to(B, tb)
    if Bp != B:
        x = jnp.pad(x, ((0, Bp - B), (0, 0)))

    out = pl.pallas_call(
        cbow_fused_kernel,
        out_shape=jax.ShapeDtypeStruct((Bp, n_pad), out_dtype),
        grid_spec=pltpu.PrefetchScalarGridSpec(
            num_scalar_prefetch=0,
            grid=(Bp // tb,),
            in_specs=[
                pl.BlockSpec((tb, F), lambda i: (i, 0)),          # packed activations (bf16)
                pl.BlockSpec((F, hidden), lambda i: (0, 0)),      # folded fc1 weight (bf16)
                pl.BlockSpec((hidden, n_pad), lambda i: (0, 0)),  # fc2 weight, lane padded (bf16)
                pl.BlockSpec((2, bw), lambda i: (0, 0)),          # packed biases (f32)
            ],
            out_specs=pl.BlockSpec((tb, n_pad), lambda i: (i, 0)),
        ),
        compiler_params=pltpu.CompilerParams(
            dimension_semantics=("parallel",),
            vmem_limit_bytes=32 * 1024 * 1024,
        ),
    )(x, wfold, w2_pad, biases)

    if return_padded:
        # consumer must mask rows >= B and lanes >= n_actions; avoids re-reading the padded
        # (Bp, n_pad) output stream just to produce a small sliced copy.
        return out
    return out[:B, :n_actions]


def state_action_prediction_forward(s1, a1, s2, s3, a3, folded, *, tile_b=1024,
                                    out_dtype=jnp.float32, return_padded=False):
    """Forward pass. a1/a3 are int32 (B,) action indices."""
    n_actions = folded["n_actions"]
    a1_oh = jax.nn.one_hot(a1, n_actions, dtype=jnp.bfloat16)
    a3_oh = jax.nn.one_hot(a3, n_actions, dtype=jnp.bfloat16)
    # single packed activation slab: (B, 3*state_dim + 2*n_actions), bf16 matmul operand
    x = jnp.concatenate(
        [s1.astype(jnp.bfloat16), a1_oh, s2.astype(jnp.bfloat16),
         s3.astype(jnp.bfloat16), a3_oh], axis=-1)
    return _forward_impl(x, folded["wfold"], folded["w2"], folded["biases"],
                         n_actions=n_actions, tile_b=tile_b,
                         out_dtype=out_dtype, return_padded=return_padded)


def reference_forward(s1, a1, s2, s3, a3, params):
    """Pure-JAX f32 reference matching the PyTorch module (unfolded weights)."""
    se = lambda s: s @ params["ws"] + params["bs"]
    ae = lambda a: params["emb"][a]
    context = jnp.concatenate([se(s1), ae(a1), se(s2), se(s3), ae(a3)], axis=-1)
    h = jnp.maximum(context @ params["w1"] + params["b1"], 0.0)
    return h @ params["w2"] + params["b2"]


if __name__ == "__main__":
    B = 8
    state_dim = 12
    n_actions = 6
    embedding_size = 16
    context_size = 5

    key = jax.random.PRNGKey(0)
    kp, k1, k2, k3, k4, k5 = jax.random.split(key, 6)

    params = init_params(kp, state_dim, n_actions, embedding_size, context_size)
    folded = fold_params(params)

    s1 = jax.random.normal(k1, (B, state_dim), dtype=jnp.float32)
    s2 = jax.random.normal(k2, (B, state_dim), dtype=jnp.float32)
    s3 = jax.random.normal(k3, (B, state_dim), dtype=jnp.float32)
    a1 = jax.random.randint(k4, (B,), 0, n_actions, dtype=jnp.int32)
    a3 = jax.random.randint(k5, (B,), 0, n_actions, dtype=jnp.int32)

    out = state_action_prediction_forward(s1, a1, s2, s3, a3, folded)
    out = jax.block_until_ready(out)

    ref = reference_forward(s1, a1, s2, s3, a3, params)
    assert out.shape == (B, n_actions)
    # weight folding reassociates sums and matmul operands are bf16 (f32 accumulation),
    # so use a bf16-appropriate tolerance against the f32 reference
    max_err = float(jnp.max(jnp.abs(out.astype(jnp.float32) - ref)))
    assert jnp.allclose(out.astype(jnp.float32), ref, atol=3e-2, rtol=3e-2), max_err

    print("KERNEL_OK")
</pallas_src>

<mosaic_0001>
module attributes {stable_mosaic.version = 11 : i64} {
  func.func @cbow_fused_kernel(%arg0: i32, %arg1: memref<8x48xbf16, #tpu.memory_space<vmem>>, %arg2: memref<48x128xbf16, #tpu.memory_space<vmem>>, %arg3: memref<128x128xbf16, #tpu.memory_space<vmem>>, %arg4: memref<2x128xf32, #tpu.memory_space<vmem>>, %arg5: memref<8x128xf32, #tpu.memory_space<vmem>>) attributes {dimension_semantics = [#tpu.dimension_semantics<parallel>], iteration_bounds = array<i64: 1>, scalar_prefetch = 0 : i64, scratch_operands = 0 : i64, tpu.core_type = #tpu.core_type<tc>, window_params = [{transform_indices = @transform_0, window_bounds = array<i64: 8, 48>}, {pipeline_mode = #tpu.pipeline_mode<synchronous>, transform_indices = @transform_1, window_bounds = array<i64: 48, 128>}, {pipeline_mode = #tpu.pipeline_mode<synchronous>, transform_indices = @transform_2, window_bounds = array<i64: 128, 128>}, {pipeline_mode = #tpu.pipeline_mode<synchronous>, transform_indices = @transform_3, window_bounds = array<i64: 2, 128>}, {transform_indices = @transform_4, window_bounds = array<i64: 8, 128>}]} {
    %c0 = arith.constant 0 : index
    %c0_0 = arith.constant 0 : index
    %0 = vector.load %arg1[%c0, %c0_0] : memref<8x48xbf16, #tpu.memory_space<vmem>>, vector<8x48xbf16>
    %c0_1 = arith.constant 0 : index
    %c0_2 = arith.constant 0 : index
    %1 = vector.load %arg2[%c0_1, %c0_2] : memref<48x128xbf16, #tpu.memory_space<vmem>>, vector<48x128xbf16>
    %cst = arith.constant dense<0.000000e+00> : vector<8x128xf32>
    %2 = tpu.matmul %0, %1, %cst {dimension_numbers = #tpu.dot_dimension_numbers<[1], [0], [0], [1], [0, 0, 1, 1], [], []>} : vector<8x48xbf16>, vector<48x128xbf16>, vector<8x128xf32> -> vector<8x128xf32>
    %c0_3 = arith.constant 0 : index
    %c0_4 = arith.constant 0 : index
    %3 = vector.load %arg4[%c0_3, %c0_4] : memref<2x128xf32, #tpu.memory_space<vmem>>, vector<1x128xf32>
    %4 = vector.broadcast %3 : vector<1x128xf32> to vector<8x128xf32>
    %5 = arith.addf %2, %4 : vector<8x128xf32>
    %cst_5 = arith.constant 0.000000e+00 : f32
    %6 = vector.broadcast %cst_5 : f32 to vector<8x128xf32>
    %7 = arith.maximumf %5, %6 : vector<8x128xf32>
    %8 = arith.truncf %7 : vector<8x128xf32> to vector<8x128xbf16>
    %c0_6 = arith.constant 0 : index
    %c0_7 = arith.constant 0 : index
    %9 = vector.load %arg3[%c0_6, %c0_7] : memref<128x128xbf16, #tpu.memory_space<vmem>>, vector<128x128xbf16>
    %cst_8 = arith.constant dense<0.000000e+00> : vector<8x128xf32>
    %10 = tpu.matmul %8, %9, %cst_8 {dimension_numbers = #tpu.dot_dimension_numbers<[1], [0], [0], [1], [0, 0, 1, 1], [], []>} : vector<8x128xbf16>, vector<128x128xbf16>, vector<8x128xf32> -> vector<8x128xf32>
    %c1 = arith.constant 1 : index
    %c0_9 = arith.constant 0 : index
    %11 = vector.load %arg4[%c1, %c0_9] : memref<2x128xf32, #tpu.memory_space<vmem>>, vector<1x128xf32>
    %12 = vector.broadcast %11 : vector<1x128xf32> to vector<8x128xf32>
    %13 = arith.addf %10, %12 : vector<8x128xf32>
    %c0_10 = arith.constant 0 : index
    %c0_11 = arith.constant 0 : index
    %14 = vector.load %arg5[%c0_10, %c0_11] : memref<8x128xf32, #tpu.memory_space<vmem>>, vector<8x128xf32>
    tpu.vector_store %arg5[%c0_10, %c0_11], %13 {strides = array<i32>} : memref<8x128xf32, #tpu.memory_space<vmem>>, vector<8x128xf32>,
    return
  }
  func.func @transform_0(%arg0: i32) -> (i32, i32) {
    %c0_i32 = arith.constant 0 : i32
    %c0_i32_0 = arith.constant 0 : i32
    return %arg0, %c0_i32 : i32, i32
  }
  func.func @transform_1(%arg0: i32) -> (i32, i32) {
    %c0_i32 = arith.constant 0 : i32
    %c0_i32_0 = arith.constant 0 : i32
    %c0_i32_1 = arith.constant 0 : i32
    return %c0_i32, %c0_i32_0 : i32, i32
  }
  func.func @transform_2(%arg0: i32) -> (i32, i32) {
    %c0_i32 = arith.constant 0 : i32
    %c0_i32_0 = arith.constant 0 : i32
    %c0_i32_1 = arith.constant 0 : i32
    return %c0_i32, %c0_i32_0 : i32, i32
  }
  func.func @transform_3(%arg0: i32) -> (i32, i32) {
    %c0_i32 = arith.constant 0 : i32
    %c0_i32_0 = arith.constant 0 : i32
    %c0_i32_1 = arith.constant 0 : i32
    return %c0_i32, %c0_i32_0 : i32, i32
  }
  func.func @transform_4(%arg0: i32) -> (i32, i32) {
    %c0_i32 = arith.constant 0 : i32
    %c0_i32_0 = arith.constant 0 : i32
    return %arg0, %c0_i32 : i32, i32
  }
}

</mosaic_0001>

<llo_original>
// kernel: _forward_impl.1
$region0: #{_forward_impl.1}
  #allocation0 [shape = 'u32[]', space=smem, size = 0x4, offset = 0x4, fixed_abs, tag = 'smem constant byte address 0x4 - core index']
  #allocation1 [shape = 'u32[72,128]{1,0:T(1,128)}', space=vmem, size = 0x9000, scoped, tag = 'internal scratch']
  %s0 = inlined_call_operand.hbm [shape: bf16[8,48], index: 0, kind: input, shape index: {}]
  %s1 = inlined_call_operand.hbm [shape: bf16[48,128], index: 1, kind: input, shape index: {}]
  %s2 = inlined_call_operand.hbm [shape: bf16[128,128], index: 2, kind: input, shape index: {}]
  %s3 = inlined_call_operand.vmem [shape: f32[2,128], index: 3, kind: input, shape index: {}]
  %s4 = inlined_call_operand.hbm [shape: f32[8,128], index: 4, kind: output, shape index: {}]
  %s5 = sld [smem:[#allocation0]]
  $region38: #{_forward_impl.1} parent=0
    _
  %s7 = ssub.s32 1, %s5
  %s8 = scalar_select 0, %s7, %s5
  $region1: #{_forward_impl.1} parent=0
    #allocation2 [shape = 'u8[2048]{0}', space=vmem, size = 0x800, scoped, tag = 'input window, operand 0, single buffered']
    #allocation3 [shape = 's32[1]{0}', space=sflag, size = 0x4, scoped, tag = 'scoped memory for _forward_impl.1']
    #allocation4 [shape = 's32[1]{0}', space=sflag, size = 0x4, scoped, tag = 'scoped memory for _forward_impl.1']
    #allocation5 [shape = 'u8[12288]{0}', space=vmem, size = 0x3000, scoped, tag = 'input window, operand 1, single buffered']
    #allocation6 [shape = 's32[1]{0}', space=sflag, size = 0x4, scoped, tag = 'scoped memory for _forward_impl.1']
    #allocation7 [shape = 'u8[32768]{0}', space=vmem, size = 0x8000, scoped, tag = 'input window, operand 2, single buffered']
    #allocation8 [shape = 'u8[4096]{0}', space=vmem, size = 0x1000, scoped, tag = 'output window, operand 0, single buffered']
    %9 = vsyncpa [#allocation3], 0
    %10 = vsyncpa [#allocation6], 0
    %11 = vsyncpa [#allocation4], 0
    // Predicated region
    $region2: #{_forward_impl.1} parent=1 // pred_check
      _
    $region3: #{_forward_impl.1} parent=1 // pred_check_branch
      %13 = sbr.rel (0) target = $region5
    $region4: #{_forward_impl.1} parent=1 // pred_region
      %15 = vsyncadd [#allocation3], 0
      %s17 = sshll.u32 %s0, 4
      %s18 = int_to_ptr.hbm [resolvable:$true] %s17
      %s19 = sshll.u32 [#allocation2], 4
      %s20 = int_to_ptr.vmem [resolvable:$true] %s19
      %22 = dma.hbm_to_vmem [thread:$0]  %s18, 64, %s20, [#allocation3]
    $region5: #{_forward_impl.1} parent=1 // pred_fallthru
      _
    // Predicated region
    $region6: #{_forward_impl.1} parent=1 // pred_check
      _
    $region7: #{_forward_impl.1} parent=1 // pred_check_branch
      %24 = sbr.rel (0) target = $region9
    $region8: #{_forward_impl.1} parent=1 // pred_region
      %26 = vsyncadd [#allocation6], 0
      %s27 = sshll.u32 %s1, 4
      %s28 = int_to_ptr.hbm [resolvable:$true] %s27
      %s29 = sshll.u32 [#allocation5], 4
      %s30 = int_to_ptr.vmem [resolvable:$true] %s29
      %35 = dma.hbm_to_vmem [thread:$0]  %s28, 384, %s30, [#allocation6], 64, 64, 4
    $region9: #{_forward_impl.1} parent=1 // pred_fallthru
      _
    // Predicated region
    $region10: #{_forward_impl.1} parent=1 // pred_check
      _
    $region11: #{_forward_impl.1} parent=1 // pred_check_branch
      %37 = sbr.rel (0) target = $region13
    $region12: #{_forward_impl.1} parent=1 // pred_region
      %39 = vsyncadd [#allocation6], 0
      %s40 = sshll.u32 %s2, 4
      %s41 = int_to_ptr.hbm [resolvable:$true] %s40
      %s42 = sshll.u32 [#allocation7], 4
      %s43 = int_to_ptr.vmem [resolvable:$true] %s42
      %48 = dma.hbm_to_vmem [thread:$0]  %s41, 1024, %s43, [#allocation6], 64, 64, 4
    $region13: #{_forward_impl.1} parent=1 // pred_fallthru
      _
    // Predicated region
    $region14: #{_forward_impl.1} parent=1 // pred_check
      _
    $region15: #{_forward_impl.1} parent=1 // pred_check_branch
      %50 = sbr.rel (0) target = $region17
    $region16: #{_forward_impl.1} parent=1 // pred_region
      _
    $region17: #{_forward_impl.1} parent=1 // pred_fallthru
      _
    // Predicated region
    $region18: #{_forward_impl.1} parent=1 // pred_check
      _
    $region19: #{_forward_impl.1} parent=1 // pred_check_branch
      %52 = sbr.rel (0) target = $region21
    $region20: #{_forward_impl.1} parent=1 // pred_region
      %54 = dma.done [#allocation3], 64
    $region21: #{_forward_impl.1} parent=1 // pred_fallthru
      _
    // Predicated region
    $region22: #{_forward_impl.1} parent=1 // pred_check
      _
    $region23: #{_forward_impl.1} parent=1 // pred_check_branch
      %56 = sbr.rel (0) target = $region25
    $region24: #{_forward_impl.1} parent=1 // pred_region
      %58 = dma.done [#allocation6], 384
    $region25: #{_forward_impl.1} parent=1 // pred_fallthru
      _
    // Predicated region
    $region26: #{_forward_impl.1} parent=1 // pred_check
      _
    $region27: #{_forward_impl.1} parent=1 // pred_check_branch
      %60 = sbr.rel (0) target = $region29
    $region28: #{_forward_impl.1} parent=1 // pred_region
      %62 = dma.done [#allocation6], 1024
    $region29: #{_forward_impl.1} parent=1 // pred_fallthru
      _
    %v64 = vld [vmem:[#allocation2] sm:$0xf]
    %v65 = vld [vmem:[#allocation5] sm:$0xf]
    %v66 = vld [vmem:[#allocation5 + $0x4] sm:$0xf]
    %v67 = vld [vmem:[#allocation5 + $0x8] sm:$0xf]
    %v68 = vld [vmem:[#allocation5 + $0xc] sm:$0xf]
    %v69 = vld [vmem:[#allocation5 + $0x10] sm:$0xf]
    %v70 = vld [vmem:[#allocation5 + $0x14] sm:$0xf]
    %v71 = vld [vmem:[%s3] sm:$0x1]
    %v72 = vperm.slane %v71, 0
    %v79 = vunpack.c.l.b16 %v65
    %v80 = vunpack.c.l.b16 %v66
    %v81 = vunpack.c.l.b16 %v67
    %v82 = vunpack.c.l.b16 %v68
    %v83 = vunpack.c.l.b16 %v69
    %v84 = vunpack.c.l.b16 %v70
    %v85 = vpack.c.b16 %v80, %v79
    %v86 = vpack.c.b16 %v82, %v81
    %v87 = vpack.c.b16 %v84, %v83
    %vm91 = vcmask 392192
    %v93 = vsel %vm91, %v64, 0
    %95 = vmatpush.bf16.msra.mxu0 0
    %96 = vmatpush.bf16.msra.mxu0 0
    %97 = vmatpush.bf16.msra.mxu0 0
    %98 = vmatpush.bf16.msra.mxu0 0
    %99 = vmatpush.bf16.msra.mxu0 0
    %100 = vmatpush.bf16.msra.mxu0 %v87
    %101 = vmatpush.bf16.msra.mxu0 %v86
    %102 = vmatpush.bf16.msra.mxu0 %v85
    %103 = vmatmul.bf16.gmra.mxu0 %v93
    %v104 = vpop.f32.mrf.mxu0
    %v105 = vadd.f32 %v72, %v104
    %v106 = vpop.f32.mrf.mxu0
    %107 = vdwg.mxu0
    %v108 = vmax.f32 %v105, 0.0
    %v109 = vpack.c.bf16 %v108, %v108
    %v110 = vld [vmem:[#allocation7] sm:$0xf]
    %v111 = vld [vmem:[#allocation7 + $0x4] sm:$0xf]
    %v112 = vld [vmem:[#allocation7 + $0x8] sm:$0xf]
    %v113 = vld [vmem:[#allocation7 + $0xc] sm:$0xf]
    %v114 = vld [vmem:[#allocation7 + $0x10] sm:$0xf]
    %v115 = vld [vmem:[#allocation7 + $0x14] sm:$0xf]
    %v116 = vld [vmem:[#allocation7 + $0x18] sm:$0xf]
    %v117 = vld [vmem:[#allocation7 + $0x1c] sm:$0xf]
    %v118 = vld [vmem:[#allocation7 + $0x20] sm:$0xf]
    %v119 = vld [vmem:[#allocation7 + $0x24] sm:$0xf]
    %v120 = vld [vmem:[#allocation7 + $0x28] sm:$0xf]
    %v121 = vld [vmem:[#allocation7 + $0x2c] sm:$0xf]
    %v122 = vld [vmem:[#allocation7 + $0x30] sm:$0xf]
    %v123 = vld [vmem:[#allocation7 + $0x34] sm:$0xf]
    %v124 = vld [vmem:[#allocation7 + $0x38] sm:$0xf]
    %v125 = vld [vmem:[#allocation7 + $0x3c] sm:$0xf]
    %v126 = vld [vmem:[%s3 + $0x1] sm:$0x1]
    %v127 = vperm.slane %v126, 0
    %v144 = vunpack.c.l.b16 %v110
    %v145 = vunpack.c.l.b16 %v111
    %v146 = vunpack.c.l.b16 %v112
    %v147 = vunpack.c.l.b16 %v113
    %v148 = vunpack.c.l.b16 %v114
    %v149 = vunpack.c.l.b16 %v115
    %v150 = vunpack.c.l.b16 %v116
    %v151 = vunpack.c.l.b16 %v117
    %v152 = vunpack.c.l.b16 %v118
    %v153 = vunpack.c.l.b16 %v119
    %v154 = vunpack.c.l.b16 %v120
    %v155 = vunpack.c.l.b16 %v121
    %v156 = vunpack.c.l.b16 %v122
    %v157 = vunpack.c.l.b16 %v123
    %v158 = vunpack.c.l.b16 %v124
    %v159 = vunpack.c.l.b16 %v125
    %v160 = vpack.c.b16 %v145, %v144
    %v161 = vpack.c.b16 %v147, %v146
    %v162 = vpack.c.b16 %v149, %v148
    %v163 = vpack.c.b16 %v151, %v150
    %v164 = vpack.c.b16 %v153, %v152
    %v165 = vpack.c.b16 %v155, %v154
    %v166 = vpack.c.b16 %v157, %v156
    %v167 = vpack.c.b16 %v159, %v158
    %176 = vmatpush.bf16.msra.mxu0 %v167
    %177 = vmatpush.bf16.msra.mxu0 %v166
    %178 = vmatpush.bf16.msra.mxu0 %v165
    %179 = vmatpush.bf16.msra.mxu0 %v164
    %180 = vmatpush.bf16.msra.mxu0 %v163
    %181 = vmatpush.bf16.msra.mxu0 %v162
    %182 = vmatpush.bf16.msra.mxu0 %v161
    %183 = vmatpush.bf16.msra.mxu0 %v160
    %184 = vmatmul.bf16.gmra.mxu0 %v109
    %v185 = vpop.f32.mrf.mxu0
    %v186 = vadd.f32 %v127, %v185
    %v187 = vpop.f32.mrf.mxu0
    %188 = vdwg.mxu0
    %189 = vst [vmem:[#allocation8] sm:$0xff] %v186
    // Predicated region
    $region30: #{_forward_impl.1} parent=1 // pred_check
      _
    $region31: #{_forward_impl.1} parent=1 // pred_check_branch
      %191 = sbr.rel (0) target = $region33
    $region32: #{_forward_impl.1} parent=1 // pred_region
      %193 = vsyncadd [#allocation4], 0
      %s195 = sshll.u32 [#allocation8], 4
      %s196 = int_to_ptr.vmem [resolvable:$true] %s195
      %s197 = sshll.u32 %s4, 4
      %s198 = int_to_ptr.hbm [resolvable:$true] %s197
      %200 = dma.vmem_to_hbm [thread:$0]  %s196, 128, %s198, [#allocation4]
    $region33: #{_forward_impl.1} parent=1 // pred_fallthru
      _
    // Predicated region
    $region34: #{_forward_impl.1} parent=1 // pred_check
      _
    $region35: #{_forward_impl.1} parent=1 // pred_check_branch
      %202 = sbr.rel (0) target = $region37
    $region36: #{_forward_impl.1} parent=1 // pred_region
      %204 = dma.done [#allocation4], 128
    $region37: #{_forward_impl.1} parent=1 // pred_fallthru
      _
    %205 = vsyncpa [#allocation3], 1
    %206 = vsyncpa [#allocation6], 1
    %207 = vsyncpa [#allocation4], 1

</llo_original>
